<compile_context>
chip_gen: v7x
topology: tpu7x:2x2x1
jax: 0.10.0
libtpu: 0.0.40
codegen_flags: <defaults>
</compile_context>

<pallas_src>
import jax
import jax.numpy as jnp
from jax.experimental import pallas as pl
from jax.experimental.pallas import tpu as pltpu


def _pick_time_tile(t: int, pad: int) -> int:
    """Largest lane-friendly tile that divides T and covers the causal halo."""
    for tt in (1024, 512, 256, 128):
        if t % tt == 0 and tt >= pad:
            return tt
    return t  # small / odd T: a single tile equal to the full extent


def _make_causal_conv1d_kernel(ksize, dilation, c_in, tt, pad, use_prev):
    """Builds the kernel body.

    Refs (use_prev=True):
      x_cur  : (1, Cin, TT)    current time tile (NCT layout, time on lanes)
      x_prev : (1, Cin, TT)    previous time tile (halo source)
      w      : (Cout, K*Cin)   taps folded into the contraction dim
      b      : (Cout, 1)
      o      : (1, Cout, TT)
      window : VMEM (Cin, pad+TT) scratch  -- halo + current tile
      xcat   : VMEM (K*Cin, TT)  scratch  -- im2col block
    """

    def _compute(x_cur_ref, x_prev_ref, w_ref, b_ref, o_ref, window_ref, xcat_ref):
        if pad > 0:
            if use_prev:
                i = pl.program_id(1)

                @pl.when(i == 0)
                def _zero_halo():  # causal zero padding for the first time tile
                    window_ref[:, 0:pad] = jnp.zeros((c_in, pad), window_ref.dtype)

                @pl.when(i > 0)
                def _copy_halo():  # last `pad` samples of the previous tile
                    window_ref[:, 0:pad] = x_prev_ref[0, :, tt - pad:tt]
            else:
                window_ref[:, 0:pad] = jnp.zeros((c_in, pad), window_ref.dtype)

        window_ref[:, pad:pad + tt] = x_cur_ref[0]

        # im2col over taps: row block j holds x shifted by j*dilation.
        for j in range(ksize):
            xcat_ref[j * c_in:(j + 1) * c_in, :] = (
                window_ref[:, j * dilation:j * dilation + tt])

        # Single fused MXU matmul, contraction depth K*Cin, f32 accumulation.
        y = jnp.dot(w_ref[...], xcat_ref[...], preferred_element_type=jnp.float32)
        y = y + b_ref[...]                       # (Cout, 1) broadcast over lanes
        o_ref[0] = y.astype(o_ref.dtype)

    if use_prev:
        return _compute

    def _compute_no_prev(x_cur_ref, w_ref, b_ref, o_ref, window_ref, xcat_ref):
        _compute(x_cur_ref, None, w_ref, b_ref, o_ref, window_ref, xcat_ref)

    return _compute_no_prev


def causal_conv1d(x_nct, weight, bias, *, dilation: int = 1):
    """x_nct: (N, Cin, T); weight: (Cout, Cin, K); bias: (Cout,).
    Returns (N, Cout, T), matching PyTorch CausalConv1d (stride=1, groups=1)."""
    n, c_in, t = x_nct.shape
    c_out, c_in_w, ksize = weight.shape
    # TODO(synk): groups > 1 and stride > 1 variants of nn.Conv1d are not implemented.
    assert c_in_w == c_in, "only groups=1 is supported"
    pad = (ksize - 1) * dilation

    tt = _pick_time_tile(t, pad)
    n_t = t // tt
    use_prev = (n_t > 1) and (pad > 0)

    # Tiny one-time weight/bias reshapes (no per-sample HBM traffic).
    w2d = jnp.transpose(weight, (0, 2, 1)).reshape(c_out, ksize * c_in)
    b2d = bias.reshape(c_out, 1)

    kernel = _make_causal_conv1d_kernel(ksize, dilation, c_in, tt, pad, use_prev)

    in_specs = [pl.BlockSpec((1, c_in, tt), lambda b, i: (b, 0, i))]
    args = [x_nct]
    if use_prev:
        in_specs.append(
            pl.BlockSpec((1, c_in, tt),
                         lambda b, i: (b, 0, jnp.maximum(i - 1, 0))))
        args.append(x_nct)
    in_specs += [
        pl.BlockSpec((c_out, ksize * c_in), lambda b, i: (0, 0)),
        pl.BlockSpec((c_out, 1), lambda b, i: (0, 0)),
    ]
    args += [w2d, b2d]

    itemsize = x_nct.dtype.itemsize
    bytes_accessed = (x_nct.size * itemsize * (2 if use_prev else 1)
                      + w2d.size * itemsize + b2d.size * itemsize
                      + n * c_out * t * itemsize)
    cost = pl.CostEstimate(flops=2 * n * t * ksize * c_in * c_out,
                           transcendentals=0,
                           bytes_accessed=int(bytes_accessed))

    out = pl.pallas_call(
        kernel,
        out_shape=jax.ShapeDtypeStruct((n, c_out, t), x_nct.dtype),
        grid_spec=pltpu.PrefetchScalarGridSpec(
            num_scalar_prefetch=0,
            grid=(n, n_t),
            in_specs=in_specs,
            out_specs=pl.BlockSpec((1, c_out, tt), lambda b, i: (b, 0, i)),
            scratch_shapes=[
                pltpu.VMEM((c_in, tt + pad), x_nct.dtype),    # halo + current tile
                pltpu.VMEM((ksize * c_in, tt), x_nct.dtype),  # im2col block
            ]),
        compiler_params=pltpu.CompilerParams(
            dimension_semantics=("parallel", "parallel"),
            vmem_limit_bytes=48 * 1024 * 1024),
        cost_estimate=cost,
    )(*args)
    return out


def _reference_causal_conv1d(x_nct, weight, bias, *, dilation: int = 1):
    """Independent reference via lax.conv_general_dilated (left-pad only)."""
    k = weight.shape[-1]
    pad = (k - 1) * dilation
    y = jax.lax.conv_general_dilated(
        x_nct, weight,
        window_strides=(1,),
        padding=[(pad, 0)],
        rhs_dilation=(dilation,),
        dimension_numbers=("NCH", "OIH", "NCH"),
    )
    return y + bias[None, :, None]


def _run_case(key, batch, c_in, c_out, ksize, dilation, t):
    kx, kw, kb = jax.random.split(key, 3)
    x = jax.random.normal(kx, (batch, c_in, t), dtype=jnp.float32)
    # Deterministic synthetic parameter init (no checkpoint loading).
    fan_in = c_in * ksize
    bound = 1.0 / (fan_in ** 0.5)
    weight = jax.random.uniform(kw, (c_out, c_in, ksize),
                                minval=-bound, maxval=bound, dtype=jnp.float32)
    bias = jax.random.uniform(kb, (c_out,),
                              minval=-bound, maxval=bound, dtype=jnp.float32)

    y = jax.block_until_ready(causal_conv1d(x, weight, bias, dilation=dilation))
    y_ref = _reference_causal_conv1d(x, weight, bias, dilation=dilation)
    assert y.shape == (batch, c_out, t)
    assert jnp.allclose(y, y_ref, atol=1e-5, rtol=1e-5)


if __name__ == "__main__":
    key = jax.random.PRNGKey(0)
    k1, k2 = jax.random.split(key)
    # Small config matching the module (single time tile path).
    _run_case(k1, batch=2, c_in=4, c_out=8, ksize=3, dilation=2, t=16)
    # Longer sequence exercising the tiled-time + previous-tile-halo path
    # (TT=128, 3 time tiles per batch element).
    _run_case(k2, batch=2, c_in=4, c_out=8, ksize=3, dilation=2, t=384)
    print("KERNEL_OK")
</pallas_src>

<mosaic_0001>
module attributes {stable_mosaic.version = 11 : i64} {
  func.func @_compute_no_prev(%arg0: i32, %arg1: i32, %arg2: memref<1x4x16xf32, #tpu.memory_space<vmem>>, %arg3: memref<8x12xf32, #tpu.memory_space<vmem>>, %arg4: memref<8x1xf32, #tpu.memory_space<vmem>>, %arg5: memref<1x8x16xf32, #tpu.memory_space<vmem>>, %arg6: memref<4x20xf32, #tpu.memory_space<vmem>>, %arg7: memref<12x16xf32, #tpu.memory_space<vmem>>) attributes {dimension_semantics = [#tpu.dimension_semantics<parallel>, #tpu.dimension_semantics<parallel>], iteration_bounds = array<i64: 2, 1>, scalar_prefetch = 0 : i64, scratch_operands = 2 : i64, tpu.core_type = #tpu.core_type<tc>, window_params = [{transform_indices = @transform_0, window_bounds = array<i64: 1, 4, 16>}, {pipeline_mode = #tpu.pipeline_mode<synchronous>, transform_indices = @transform_1, window_bounds = array<i64: 8, 12>}, {pipeline_mode = #tpu.pipeline_mode<synchronous>, transform_indices = @transform_2, window_bounds = array<i64: 8, 1>}, {transform_indices = @transform_3, window_bounds = array<i64: 1, 8, 16>}]} {
    %cst = arith.constant 0.000000e+00 : f32
    %0 = vector.broadcast %cst : f32 to vector<4x4xf32>
    %c0 = arith.constant 0 : index
    %c0_0 = arith.constant 0 : index
    %1 = vector.load %arg6[%c0, %c0_0] : memref<4x20xf32, #tpu.memory_space<vmem>>, vector<4x4xf32>
    tpu.vector_store %arg6[%c0, %c0_0], %0 {strides = array<i32>} : memref<4x20xf32, #tpu.memory_space<vmem>>, vector<4x4xf32>,
    %c0_1 = arith.constant 0 : index
    %c0_2 = arith.constant 0 : index
    %c0_3 = arith.constant 0 : index
    %2 = vector.load %arg2[%c0_1, %c0_2, %c0_3] : memref<1x4x16xf32, #tpu.memory_space<vmem>>, vector<1x4x16xf32>
    %3 = vector.shape_cast %2 : vector<1x4x16xf32> to vector<4x16xf32>
    %c0_4 = arith.constant 0 : index
    %c4 = arith.constant 4 : index
    %4 = vector.load %arg6[%c0_4, %c4] : memref<4x20xf32, #tpu.memory_space<vmem>>, vector<4x16xf32>
    tpu.vector_store %arg6[%c0_4, %c4], %3 {strides = array<i32>} : memref<4x20xf32, #tpu.memory_space<vmem>>, vector<4x16xf32>,
    %c0_5 = arith.constant 0 : index
    %c0_6 = arith.constant 0 : index
    %5 = vector.load %arg6[%c0_5, %c0_6] : memref<4x20xf32, #tpu.memory_space<vmem>>, vector<4x16xf32>
    %c0_7 = arith.constant 0 : index
    %c0_8 = arith.constant 0 : index
    %6 = vector.load %arg7[%c0_7, %c0_8] : memref<12x16xf32, #tpu.memory_space<vmem>>, vector<4x16xf32>
    tpu.vector_store %arg7[%c0_7, %c0_8], %5 {strides = array<i32>} : memref<12x16xf32, #tpu.memory_space<vmem>>, vector<4x16xf32>,
    %c0_9 = arith.constant 0 : index
    %c2 = arith.constant 2 : index
    %7 = vector.load %arg6[%c0_9, %c2] : memref<4x20xf32, #tpu.memory_space<vmem>>, vector<4x16xf32>
    %c4_10 = arith.constant 4 : index
    %c0_11 = arith.constant 0 : index
    %8 = vector.load %arg7[%c4_10, %c0_11] : memref<12x16xf32, #tpu.memory_space<vmem>>, vector<4x16xf32>
    tpu.vector_store %arg7[%c4_10, %c0_11], %7 {strides = array<i32>} : memref<12x16xf32, #tpu.memory_space<vmem>>, vector<4x16xf32>,
    %c0_12 = arith.constant 0 : index
    %c4_13 = arith.constant 4 : index
    %9 = vector.load %arg6[%c0_12, %c4_13] : memref<4x20xf32, #tpu.memory_space<vmem>>, vector<4x16xf32>
    %c8 = arith.constant 8 : index
    %c0_14 = arith.constant 0 : index
    %10 = vector.load %arg7[%c8, %c0_14] : memref<12x16xf32, #tpu.memory_space<vmem>>, vector<4x16xf32>
    tpu.vector_store %arg7[%c8, %c0_14], %9 {strides = array<i32>} : memref<12x16xf32, #tpu.memory_space<vmem>>, vector<4x16xf32>,
    %c0_15 = arith.constant 0 : index
    %c0_16 = arith.constant 0 : index
    %11 = vector.load %arg3[%c0_15, %c0_16] : memref<8x12xf32, #tpu.memory_space<vmem>>, vector<8x12xf32>
    %c0_17 = arith.constant 0 : index
    %c0_18 = arith.constant 0 : index
    %12 = vector.load %arg7[%c0_17, %c0_18] : memref<12x16xf32, #tpu.memory_space<vmem>>, vector<12x16xf32>
    %cst_19 = arith.constant dense<0.000000e+00> : vector<8x16xf32>
    %13 = tpu.matmul %11, %12, %cst_19 {dimension_numbers = #tpu.dot_dimension_numbers<[1], [0], [0], [1], [0, 0, 1, 1], [], []>} : vector<8x12xf32>, vector<12x16xf32>, vector<8x16xf32> -> vector<8x16xf32>
    %c0_20 = arith.constant 0 : index
    %c0_21 = arith.constant 0 : index
    %14 = vector.load %arg4[%c0_20, %c0_21] : memref<8x1xf32, #tpu.memory_space<vmem>>, vector<8x1xf32>
    %15 = vector.broadcast %14 : vector<8x1xf32> to vector<8x16xf32>
    %16 = arith.addf %13, %15 : vector<8x16xf32>
    %c0_22 = arith.constant 0 : index
    %c0_23 = arith.constant 0 : index
    %c0_24 = arith.constant 0 : index
    %17 = vector.load %arg5[%c0_22, %c0_23, %c0_24] : memref<1x8x16xf32, #tpu.memory_space<vmem>>, vector<1x8x16xf32>
    %18 = vector.shape_cast %17 : vector<1x8x16xf32> to vector<8x16xf32>
    %19 = vector.shape_cast %16 : vector<8x16xf32> to vector<1x8x16xf32>
    tpu.vector_store %arg5[%c0_22, %c0_23, %c0_24], %19 {strides = array<i32>} : memref<1x8x16xf32, #tpu.memory_space<vmem>>, vector<1x8x16xf32>,
    return
  }
  func.func @transform_0(%arg0: i32, %arg1: i32) -> (i32, i32, i32) {
    %c0_i32 = arith.constant 0 : i32
    %c0_i32_0 = arith.constant 0 : i32
    return %arg0, %c0_i32, %arg1 : i32, i32, i32
  }
  func.func @transform_1(%arg0: i32, %arg1: i32) -> (i32, i32) {
    %c0_i32 = arith.constant 0 : i32
    %c0_i32_0 = arith.constant 0 : i32
    %c0_i32_1 = arith.constant 0 : i32
    return %c0_i32, %c0_i32_0 : i32, i32
  }
  func.func @transform_2(%arg0: i32, %arg1: i32) -> (i32, i32) {
    %c0_i32 = arith.constant 0 : i32
    %c0_i32_0 = arith.constant 0 : i32
    %c0_i32_1 = arith.constant 0 : i32
    return %c0_i32, %c0_i32_0 : i32, i32
  }
  func.func @transform_3(%arg0: i32, %arg1: i32) -> (i32, i32, i32) {
    %c0_i32 = arith.constant 0 : i32
    %c0_i32_0 = arith.constant 0 : i32
    return %arg0, %c0_i32, %arg1 : i32, i32, i32
  }
}

</mosaic_0001>

<llo_original>
// kernel: tpu_custom_call.1
$region0: #{tpu_custom_call.1}
  #allocation0 [shape = 'u32[]', space=smem, size = 0x4, offset = 0x4, fixed_abs, tag = 'smem constant byte address 0x4 - core index']
  #allocation1 [shape = 'u32[144,128]{1,0:T(1,128)}', space=vmem, size = 0x12000, scoped, tag = 'internal scratch']
  #allocation2 [shape = 'f32[4,20]{1,0:T(4,128)}', space=vmem, size = 0x800, scoped, tag = 'scratch operand']
  #allocation3 [shape = 'f32[12,16]{1,0:T(8,128)}', space=vmem, size = 0x2000, scoped, tag = 'scratch operand']
  %s0 = inlined_call_operand.vmem [shape: f32[2,4,16], index: 0, kind: input, shape index: {}]
  %s1 = inlined_call_operand.hbm [shape: f32[8,12], index: 1, kind: input, shape index: {}]
  %s2 = inlined_call_operand.vmem [shape: f32[8,1], index: 2, kind: input, shape index: {}]
  %s3 = inlined_call_operand.hbm [shape: f32[2,8,16], index: 3, kind: output, shape index: {}]
  %s4 = sld [smem:[#allocation0]]
  $region49: #{tpu_custom_call.1} parent=0
    _
  %s6 = ssub.s32 1, %s4
  %s7 = scalar_select 0, %s6, %s4
  $region1: #{tpu_custom_call.1} parent=0
    #allocation4 [shape = 'u8[4096]{0}', space=vmem, size = 0x1000, scoped, tag = 'input window, operand 1, single buffered']
    #allocation5 [shape = 's32[2]{0}', space=sflag, size = 0x8, scoped, tag = 'scoped memory for tpu_custom_call.1']
    #allocation6 [shape = 's32[2]{0}', space=sflag, size = 0x8, scoped, tag = 'scoped memory for tpu_custom_call.1']
    #allocation7 [shape = 'u8[8192]{0}', space=vmem, size = 0x2000, scoped, tag = 'output window, operand 0']
    %8 = vsyncpa [#allocation5], 0
    %9 = vsyncpa [#allocation6], 0
    %s10 = scalar_lea.sflag [#allocation6], 1
    %11 = vsyncpa %s10, 0
    loop: start=0, step=1, limit=4
    $region2: #{tpu_custom_call.1} parent=1 // loop_pre_header
      _
    $region3: #{tpu_custom_call.1} parent=1 // loop_header
      %s13 = sphi 0, %s17
      %p14 = scmp.ge.s32.totalorder %s13, 4
      %s20 = sphi 0, %s32
      %s21 = sphi 0, %s28
      %s22 = sphi 0, %s20
      %s23 = sphi 0, %s21
      %s24 = sphi 0, %s22
      %s25 = sphi 0, %s23
      %s37 = sphi 0, %s39
      %s40 = sphi 0, %s37
      %s41 = sphi 0, %s40
      %s57 = sphi 0, %s41
      %s61 = sphi 0, %s61
      %s63 = sphi 0, %s61
      %s64 = sphi 0, %s63
      %s78 = sphi 0, %s64
      %s82 = sphi 0, %s82
      %s84 = sphi 0, %s82
      %s85 = sphi 0, %s84
      %s99 = sphi 0, %s85
      %s107 = sphi 0, %s109
      %s110 = sphi 0, %s107
      %s111 = sphi 0, %s110
      %s127 = sphi 0, %s111
    $region4: #{tpu_custom_call.1} parent=1 // loop_header_branch
      %16 = sbr.rel (%p14) target = $region8
    $region5: #{tpu_custom_call.1} parent=1 // loop_body
      %s18 = ssub.s32 %s13, 1
      %s19 = ssub.s32 %s13, 2
      %s26 = sadd.s32 1, %s21
      %p27 = scmp.ge.s32.totalorder %s26, 1
      %s28 = scalar_select %p27, 0, %s26
      %s29 = sadd.s32 1, %s20
      %s30 = scalar_select %p27, %s29, %s20
      %p31 = scmp.ge.s32.totalorder %s30, 2
      %s32 = scalar_select %p31, 0, %s30
      %s33 = ssub.s32 %s20, %s32
      %s34 = ssub.s32 %s21, %s28
      %s35 = sor.u32 %s33, %s34
      %p36 = scmp.eq.s32.totalorder %s35, 0
      %s38 = sadd.s32 %s37, 1
      %s39 = scalar_select %p36, %s37, %s38
      %p42 = pneg %p36
      %p43 = scmp.eq.s32.totalorder %s13, 1
      %p44 = por %p42, %p43
      %p45 = scmp.ne.s32.totalorder %s37, %s40
      %p46 = scmp.eq.s32.totalorder %s13, 0
      %p47 = por %p45, %p46
      %p48 = scmp.ne.s32.totalorder %s37, %s40
      %p49 = scmp.eq.s32.totalorder %s18, 1
      %p50 = por %p48, %p49
      %p51 = scmp.ne.s32.totalorder %s40, %s41
      %p52 = scmp.eq.s32.totalorder %s18, 0
      %p53 = por %p51, %p52
      %p54 = scmp.ne.s32.totalorder %s40, %s41
      %p55 = scmp.eq.s32.totalorder %s19, 1
      %p56 = por %p54, %p55
      %p58 = scmp.ne.s32.totalorder %s41, %s57
      %p59 = scmp.eq.s32.totalorder %s19, 0
      %p60 = por %p58, %p59
      %s62 = sadd.s32 %s61, 1
      %p65 = scmp.eq.s32.totalorder %s13, 1
      %p66 = scmp.ne.s32.totalorder %s61, %s63
      %p67 = scmp.eq.s32.totalorder %s13, 0
      %p68 = por %p66, %p67
      %p69 = scmp.ne.s32.totalorder %s61, %s63
      %p70 = scmp.eq.s32.totalorder %s18, 1
      %p71 = por %p69, %p70
      %p72 = scmp.ne.s32.totalorder %s63, %s64
      %p73 = scmp.eq.s32.totalorder %s18, 0
      %p74 = por %p72, %p73
      %p75 = scmp.ne.s32.totalorder %s63, %s64
      %p76 = scmp.eq.s32.totalorder %s19, 1
      %p77 = por %p75, %p76
      %p79 = scmp.ne.s32.totalorder %s64, %s78
      %p80 = scmp.eq.s32.totalorder %s19, 0
      %p81 = por %p79, %p80
      %s83 = sadd.s32 %s82, 1
      %p86 = scmp.eq.s32.totalorder %s13, 1
      %p87 = scmp.ne.s32.totalorder %s82, %s84
      %p88 = scmp.eq.s32.totalorder %s13, 0
      %p89 = por %p87, %p88
      %p90 = scmp.ne.s32.totalorder %s82, %s84
      %p91 = scmp.eq.s32.totalorder %s18, 1
      %p92 = por %p90, %p91
      %p93 = scmp.ne.s32.totalorder %s84, %s85
      %p94 = scmp.eq.s32.totalorder %s18, 0
      %p95 = por %p93, %p94
      %p96 = scmp.ne.s32.totalorder %s84, %s85
      %p97 = scmp.eq.s32.totalorder %s19, 1
      %p98 = por %p96, %p97
      %p100 = scmp.ne.s32.totalorder %s85, %s99
      %p101 = scmp.eq.s32.totalorder %s19, 0
      %p102 = por %p100, %p101
      %s103 = ssub.s32 %s20, %s32
      %s104 = ssub.s32 %s21, %s28
      %s105 = sor.u32 %s103, %s104
      %p106 = scmp.eq.s32.totalorder %s105, 0
      %s108 = sadd.s32 %s107, 1
      %s109 = scalar_select %p106, %s107, %s108
      %p112 = pneg %p106
      %p113 = scmp.eq.s32.totalorder %s13, 1
      %p114 = por %p112, %p113
      %p115 = scmp.ne.s32.totalorder %s107, %s110
      %p116 = scmp.eq.s32.totalorder %s13, 0
      %p117 = por %p115, %p116
      %p118 = scmp.ne.s32.totalorder %s107, %s110
      %p119 = scmp.eq.s32.totalorder %s18, 1
      %p120 = por %p118, %p119
      %p121 = scmp.ne.s32.totalorder %s110, %s111
      %p122 = scmp.eq.s32.totalorder %s18, 0
      %p123 = por %p121, %p122
      %p124 = scmp.ne.s32.totalorder %s110, %s111
      %p125 = scmp.eq.s32.totalorder %s19, 1
      %p126 = por %p124, %p125
      %p128 = scmp.ne.s32.totalorder %s111, %s127
      %p129 = scmp.eq.s32.totalorder %s19, 0
      %p130 = por %p128, %p129
      %p131 = scmp.le.s32.totalorder 1, %s13
      %p132 = scmp.lt.s32.totalorder %s13, 3
      %p133 = pnand %p131, %p132
      %p134 = pneg %p133
      // Predicated region
      $region9: #{tpu_custom_call.1} parent=5 // pred_check
        _
      $region10: #{tpu_custom_call.1} parent=5 // pred_check_branch
        %136 = sbr.rel (%p133) target = $region12
      $region11: #{tpu_custom_call.1} parent=5 // pred_region
        %s137 = ssub.s32 %s13, 1
        // Predicated region
        $region13: #{tpu_custom_call.1} parent=11 // pred_check
          %p138 = pneg %p74
        $region14: #{tpu_custom_call.1} parent=11 // pred_check_branch
          %140 = sbr.rel (%p138) target = $region16
        $region15: #{tpu_custom_call.1} parent=11 // pred_region
          %s142 = ssub.s32 128, 128
          %143 = vsyncadd [#allocation5], %s142
          %s145 = sshll.u32 [#allocation4], 4
          %s146 = int_to_ptr.vmem [resolvable:$true] %s145
          %148 = dma.hbm_to_vmem [thread:$0]  %s1, 128, %s146, [#allocation5]
        $region16: #{tpu_custom_call.1} parent=11 // pred_fallthru
          _
        // Predicated region
        $region17: #{tpu_custom_call.1} parent=11 // pred_check
          %p149 = pneg %p95
        $region18: #{tpu_custom_call.1} parent=11 // pred_check_branch
          %151 = sbr.rel (%p149) target = $region20
        $region19: #{tpu_custom_call.1} parent=11 // pred_region
          _
        $region20: #{tpu_custom_call.1} parent=11 // pred_fallthru
          _
      $region12: #{tpu_custom_call.1} parent=5 // pred_fallthru
        _
      %p152 = scmp.lt.s32.totalorder %s13, 2
      // Predicated region
      $region21: #{tpu_custom_call.1} parent=5 // pred_check
        %p153 = pneg %p152
      $region22: #{tpu_custom_call.1} parent=5 // pred_check_branch
        %155 = sbr.rel (%p153) target = $region24
      $region23: #{tpu_custom_call.1} parent=5 // pred_region
        // Predicated region
        $region25: #{tpu_custom_call.1} parent=23 // pred_check
          %p156 = pneg %p47
        $region26: #{tpu_custom_call.1} parent=23 // pred_check_branch
          %158 = sbr.rel (%p156) target = $region28
        $region27: #{tpu_custom_call.1} parent=23 // pred_region
          %p159 = scmp.lt.s32.totalorder %s20, 1
          %s160 = scalar_select %p159, %s20, 1
          %p161 = scmp.lt.s32.totalorder %s21, 0
          %s162 = scalar_select %p161, %s21, 0
          %s163 = sadd.s32 %s162, %s160
          %s164 = smul.addr %s163, 4
          %s165 = scalar_lea.vmem %s0, %s164
        $region28: #{tpu_custom_call.1} parent=23 // pred_fallthru
          _
      $region24: #{tpu_custom_call.1} parent=5 // pred_fallthru
        _
      %p166 = scmp.le.s32.totalorder 1, %s13
      %p167 = scmp.lt.s32.totalorder %s13, 3
      %p168 = pnand %p166, %p167
      %p169 = pneg %p168
      // Predicated region
      $region29: #{tpu_custom_call.1} parent=5 // pred_check
        _
      $region30: #{tpu_custom_call.1} parent=5 // pred_check_branch
        %171 = sbr.rel (%p168) target = $region32
      $region31: #{tpu_custom_call.1} parent=5 // pred_region
        %s172 = ssub.s32 %s13, 1
        // Predicated region
        $region33: #{tpu_custom_call.1} parent=31 // pred_check
          %p173 = pneg %p74
        $region34: #{tpu_custom_call.1} parent=31 // pred_check_branch
          %175 = sbr.rel (%p173) target = $region36
        $region35: #{tpu_custom_call.1} parent=31 // pred_region
          %176 = dma.done [#allocation5], 128
        $region36: #{tpu_custom_call.1} parent=31 // pred_fallthru
          _
        %p177 = scmp.lt.s32.totalorder %s22, 1
        %s178 = scalar_select %p177, %s22, 1
        %p179 = scmp.lt.s32.totalorder %s23, 0
        %s180 = scalar_select %p179, %s23, 0
        %s181 = sadd.s32 %s180, %s178
        %s182 = smul.addr %s181, 4
        %s183 = scalar_lea.vmem %s0, %s182
        %p184 = pneg %p53
        %p185 = pneg %p50
        %p186 = pneg %p74
        %p187 = pneg %p71
        %p188 = pneg %p95
        %p189 = pneg %p92
        %p190 = pneg %p123
        %p191 = pneg %p120
        %s192 = sand.u32 %s110, 1
        %s193 = scalar_lea.sflag [#allocation6], %s192
        %s194 = sand.u32 %s110, 1
        %s195 = smul.addr %s194, 8
        %s196 = scalar_lea.vmem [#allocation7], %s195
        %p197 = scmp.lt.s32.totalorder %s22, 1
        %s198 = scalar_select %p197, %s22, 1
        %p199 = scmp.lt.s32.totalorder %s23, 0
        %s200 = scalar_select %p199, %s23, 0
        %s201 = sadd.s32 %s200, %s198
        %s202 = smul.addr %s201, 4
        %s203 = scalar_lea.vmem %s0, %s202
        %vm204 = vcmask 27648
        %205 = vst.msk [vmem:[#allocation2] sm:$0xf] %vm204, 0.0
        %v206 = vld [vmem:[%s203] sm:$0xf]
        %208 = vrot.lane.b32.xlu0 %v206, 4
        %v209 = vpop.permute.xlu0 %208
        %vm211 = vcmask 158752
        %212 = vst.msk [vmem:[#allocation2] sm:$0xf] %vm211, %v209
        %v213 = vld [vmem:[#allocation2] sm:$0xf]
        %vm214 = vcmask 125952
        %215 = vst.msk [vmem:[#allocation3] sm:$0xf] %vm214, %v213
        %v216 = vld [vmem:[#allocation2] sm:$0xf]
        %218 = vrot.lane.b32.xlu0 %v216, 126
        %v219 = vpop.permute.xlu0 %218
        %221 = vst.msk [vmem:[#allocation3 + $0x4] sm:$0xf] %vm214, %v219
        %v222 = vld [vmem:[#allocation2] sm:$0xf]
        %224 = vrot.lane.b32.xlu0 %v222, 124
        %v225 = vpop.permute.xlu0 %224
        %227 = vst.msk [vmem:[#allocation3 + $0x8] sm:$0xf] %vm214, %v225
        %v228 = vld [vmem:[#allocation4] sm:$0xff]
        %v229 = vld [vmem:[#allocation3] sm:$0xff]
        %v230 = vld [vmem:[#allocation3 + $0x8] sm:$0xf]
        %v231 = vld [vmem:[%s2] sm:$0xff]
        %233 = vset.pattern.permute.xlu0 0
        %234 = vperm.xlu0 %233, %v231
        %v235 = vpop.permute.xlu0 %234
        %vm237 = vcmask 97280
        %v239 = vsel %vm237, %v228, 0
        %vm241 = vcmask 1043456
        %v243 = vsel %vm241, %v230, 0
        %245 = vmatprep.subr.mxu0 0.0
        %246 = vmatpush1.msra.mxu0 %v229
        %247 = vmatprep.subr.mxu0 0.0
        %248 = vmatpush1.msra.mxu0 %v243
        %249 = vmatprep.subr.mxu0 0.0
        %250 = vmatpush1.msra.mxu0 0.0
        %251 = vmatprep.subr.mxu0 0.0
        %252 = vmatpush1.msra.mxu0 0.0
        %253 = vmatprep.subr.mxu0 0.0
        %254 = vmatpush1.msra.mxu0 0.0
        %255 = vmatprep.subr.mxu0 0.0
        %256 = vmatpush1.msra.mxu0 0.0
        %257 = vmatprep.subr.mxu0 0.0
        %258 = vmatpush1.msra.mxu0 0.0
        %259 = vmatprep.subr.mxu0 0.0
        %260 = vmatpush1.msra.mxu0 0.0
        %261 = vmatprep.subr.mxu0 0.0
        %262 = vmatpush1.msra.mxu0 0.0
        %263 = vmatprep.subr.mxu0 0.0
        %264 = vmatpush1.msra.mxu0 0.0
        %265 = vmatprep.subr.mxu0 0.0
        %266 = vmatpush1.msra.mxu0 0.0
        %267 = vmatprep.subr.mxu0 0.0
        %268 = vmatpush1.msra.mxu0 0.0
        %269 = vmatprep.subr.mxu0 0.0
        %270 = vmatpush1.msra.mxu0 0.0
        %271 = vmatprep.subr.mxu0 0.0
        %272 = vmatpush1.msra.mxu0 0.0
        %273 = vmatprep.subr.mxu0 0.0
        %274 = vmatpush1.msra.mxu0 0.0
        %275 = vmatprep.subr.mxu0 0.0
        %276 = vmatpush1.msra.mxu0 0.0
        %277 = vmatprep.subr.mxu0 0.0
        %278 = vmatpush1.msra.mxu0 0.0
        %279 = vmatprep.subr.mxu0 0.0
        %280 = vmatpush1.msra.mxu0 0.0
        %281 = vmatprep.subr.mxu0 0.0
        %282 = vmatpush1.msra.mxu0 0.0
        %283 = vmatprep.subr.mxu0 0.0
        %284 = vmatpush1.msra.mxu0 0.0
        %285 = vmatprep.subr.mxu0 0.0
        %286 = vmatpush1.msra.mxu0 0.0
        %287 = vmatprep.subr.mxu0 0.0
        %288 = vmatpush1.msra.mxu0 0.0
        %289 = vmatprep.subr.mxu0 0.0
        %290 = vmatpush1.msra.mxu0 0.0
        %291 = vmatprep.subr.mxu0 0.0
        %292 = vmatpush1.msra.mxu0 0.0
        %293 = vmatprep.subr.mxu0 0.0
        %294 = vmatpush1.msra.mxu0 0.0
        %295 = vmatprep.subr.mxu0 0.0
        %296 = vmatpush1.msra.mxu0 0.0
        %297 = vmatprep.subr.mxu0 0.0
        %298 = vmatpush1.msra.mxu0 0.0
        %299 = vmatprep.subr.mxu0 0.0
        %300 = vmatpush1.msra.mxu0 0.0
        %301 = vmatprep.subr.mxu0 0.0
        %302 = vmatpush1.msra.mxu0 0.0
        %303 = vmatprep.subr.mxu0 0.0
        %304 = vmatpush1.msra.mxu0 0.0
        %305 = vmatprep.subr.mxu0 0.0
        %306 = vmatpush1.msra.mxu0 0.0
        %307 = vmatprep.subr.mxu0 0.0
        %308 = vmatpush1.msra.mxu0 0.0
        %309 = vmatprep.mubr.f32.mxu0 0.0
        %310 = vmatmul.mubr.f32.gmra.mrb[0].mxu0 %v239
        %v311 = vpop.f32.mrb[0].mxu0
        %v312 = vadd.f32 %v235, %v311
        %v313 = vpop.f32.mrb[0].mxu0
        %314 = vdwg.mxu0
        %vm315 = vcmask 130048
        %316 = vst.msk [vmem:[%s196] sm:$0xff] %vm315, %v312
        %s317 = sand.u32 %s110, 1
        %s318 = scalar_lea.sflag [#allocation6], %s317
        %s319 = sand.u32 %s110, 1
        %s320 = smul.addr %s319, 8
        %s321 = scalar_lea.vmem [#allocation7], %s320
        // Predicated region
        $region37: #{tpu_custom_call.1} parent=31 // pred_check
          %p322 = pneg %p120
        $region38: #{tpu_custom_call.1} parent=31 // pred_check_branch
          %324 = sbr.rel (%p322) target = $region40
        $region39: #{tpu_custom_call.1} parent=31 // pred_region
          %s326 = ssub.s32 128, 128
          %327 = vsyncadd %s318, %s326
          %s328 = sadd.s32 %s23, %s22
          %s329 = smul.addr %s328, 128
          %s330 = scalar_lea.hbm %s3, %s329
          %s332 = sshll.u32 %s321, 4
          %s333 = int_to_ptr.vmem [resolvable:$true] %s332
          %335 = dma.vmem_to_hbm [thread:$0]  %s333, 128, %s330, %s318
        $region40: #{tpu_custom_call.1} parent=31 // pred_fallthru
          _
      $region32: #{tpu_custom_call.1} parent=5 // pred_fallthru
        _
      %p336 = scmp.le.s32.totalorder 2, %s13
      // Predicated region
      $region41: #{tpu_custom_call.1} parent=5 // pred_check
        %p337 = pneg %p336
      $region42: #{tpu_custom_call.1} parent=5 // pred_check_branch
        %339 = sbr.rel (%p337) target = $region44
      $region43: #{tpu_custom_call.1} parent=5 // pred_region
        %s340 = ssub.s32 %s13, 2
        // Predicated region
        $region45: #{tpu_custom_call.1} parent=43 // pred_check
          %p341 = pneg %p126
        $region46: #{tpu_custom_call.1} parent=43 // pred_check_branch
          %343 = sbr.rel (%p341) target = $region48
        $region47: #{tpu_custom_call.1} parent=43 // pred_region
          %s344 = sand.u32 %s111, 1
          %s345 = scalar_lea.sflag [#allocation6], %s344
          %s346 = sand.u32 %s111, 1
          %s347 = smul.addr %s346, 8
          %s348 = scalar_lea.vmem [#allocation7], %s347
          %349 = dma.done %s345, 128
        $region48: #{tpu_custom_call.1} parent=43 // pred_fallthru
          _
      $region44: #{tpu_custom_call.1} parent=5 // pred_fallthru
        _
    $region6: #{tpu_custom_call.1} parent=1 // loop_footer
      %s17 = sadd.s32 1, %s13
    $region7: #{tpu_custom_call.1} parent=1 // loop_footer_branch
      %12 = sbr.rel target = $region3
    $region8: #{tpu_custom_call.1} parent=1 // loop_exit
      _
    %350 = vsyncpa [#allocation5], 1
    %s351 = scalar_lea.sflag [#allocation5], 1
    %352 = vsyncpa %s351, 1
    %353 = vsyncpa [#allocation6], 1
    %s354 = scalar_lea.sflag [#allocation6], 1
    %355 = vsyncpa %s354, 1

</llo_original>
